<compile_context>
chip_gen: v7x
topology: tpu7x:2x2x1
jax: 0.10.0
libtpu: 0.0.40
codegen_flags: <defaults>
</compile_context>

<pallas_src>
import functools

import jax
import jax.numpy as jnp
from jax.experimental import pallas as pl
from jax.experimental.pallas import tpu as pltpu

EPS = 1e-5  # torch.nn.InstanceNorm2d default eps


def _round_up(x, m):
    return -(-x // m) * m


def _sublane_multiple(itemsize):
    # 8 rows per vreg at 4 bytes; narrow dtypes pack 2x / 4x along sublanes.
    return max(8, 32 // max(int(itemsize), 1))


def _vmem_budget():
    """(per-buffer block byte target, vmem_limit_bytes), generation aware."""
    try:
        cap = int(pltpu.get_tpu_info().vmem_capacity_bytes)
    except Exception:
        cap = 64 << 20  # conservative (v7x-sized) fallback if query unavailable
    if cap >= (100 << 20):       # v5e / v6e: 128 MiB VMEM
        return 12 << 20, 96 << 20
    else:                        # v7x: 64 MiB VMEM per TensorCore
        return 6 << 20, 48 << 20


def _choose_row_tile(rows, hw, itemsize, blk_target):
    """Rows per grid step for the single-pass path; 0 => needs column split."""
    sub = _sublane_multiple(itemsize)
    if rows <= sub:
        return rows                                  # single full-extent block
    r = (blk_target // (hw * itemsize)) // sub * sub
    if r < sub:
        return 0                                     # even `sub` rows too big
    # Never larger than the (sublane-rounded-down) problem itself.
    r = min(r, max(sub, (rows // sub) * sub))
    # If the data is non-trivial but would land in <4 grid steps, split so
    # both v7x TensorCores get >=2 steps each (restores DMA/compute overlap);
    # tiny problems stay in one block.
    if rows * hw * itemsize >= (4 << 20):
        r = min(r, max(sub, (pl.cdiv(rows, 4) // sub) * sub))
    return r


# --------------------------------------------------------------------------
# Single-pass kernel (the common path): per-row stats + affine in one block.
# --------------------------------------------------------------------------
def _cin_kernel(x_ref, wb_ref, o_ref, *, inv_hw, r_tile):
    # x_ref / o_ref: (r_tile, HW).  wb_ref: (rows_ceil, 2), VMEM-resident for
    # the whole grid (constant index_map) -> slice our rows with pl.ds.
    row0 = pl.multiple_of(pl.program_id(0) * r_tile, r_tile)
    wb = wb_ref[pl.ds(row0, r_tile), :]              # (r_tile, 2) f32
    w = wb[:, 0:1]
    b = wb[:, 1:2]

    # Per-row mean (f32 accumulation even for narrow input dtypes).
    s1 = jnp.sum(x_ref[...], axis=-1, dtype=jnp.float32, keepdims=True)
    mean = s1 * inv_hw
    # Centered variance: second pass over the VMEM tile is free (HBM-bound)
    # and avoids E[x^2]-E[x]^2 cancellation (matches PyTorch more robustly).
    d = x_ref[...].astype(jnp.float32) - mean
    var = jnp.sum(d * d, axis=-1, keepdims=True) * inv_hw  # biased (PyTorch IN)
    scale = jax.lax.rsqrt(var + EPS) * w
    o_ref[...] = (d * scale + b).astype(o_ref.dtype)


# --------------------------------------------------------------------------
# Column-split fallback for very large H*W: stats kernel + apply kernel.
# --------------------------------------------------------------------------
def _stats_kernel(x_ref, s1_ref, s2_ref, *, hw, c_tile, need_col_mask):
    j = pl.program_id(1)

    @pl.when(j == 0)
    def _():
        s1_ref[...] = jnp.zeros_like(s1_ref)
        s2_ref[...] = jnp.zeros_like(s2_ref)

    x = x_ref[...].astype(jnp.float32)
    if need_col_mask:  # static: only when H*W % c_tile != 0
        col = j * c_tile + jax.lax.broadcasted_iota(jnp.int32, x.shape, 1)
        x = jnp.where(col < hw, x, 0.0)
    s1_ref[...] += jnp.sum(x, axis=-1, keepdims=True)
    s2_ref[...] += jnp.sum(x * x, axis=-1, keepdims=True)


def _apply_kernel(x_ref, ss_ref, o_ref):
    ss = ss_ref[...]                                  # (r, 2) f32 scale/shift
    scale = ss[:, 0:1]
    shift = ss[:, 1:2]
    o_ref[...] = (x_ref[...].astype(jnp.float32) * scale + shift).astype(o_ref.dtype)


# --------------------------------------------------------------------------
# Wrapper
# --------------------------------------------------------------------------
def conditional_instance_norm_2d(x, style_control, weights, biases,
                                 *, force_col_split=False, col_tile=None):
    """x: (N, C, H, W); style_control: (Bs, S); weights/biases: (S, C)."""
    N, C, H, W = x.shape
    Bs, S = style_control.shape
    HW = H * W
    rows = N * C
    itemsize = jnp.dtype(x.dtype).itemsize

    # `style_control[i % len(style_control)]` indexing from the reference.
    sc = style_control[jnp.arange(N) % Bs].astype(jnp.float32)        # (N, S)
    total = jnp.sum(sc, axis=-1, keepdims=True)                       # (N, 1)
    # sum_j sc_j*(norm*w_j + b_j) / total  ==  norm*w_eff + b_eff
    w_eff = (sc @ weights.astype(jnp.float32)) / total                # (N, C)
    b_eff = (sc @ biases.astype(jnp.float32)) / total                 # (N, C)

    x2 = x.reshape(rows, HW)
    blk_target, vmem_limit = _vmem_budget()
    r_tile = 0 if force_col_split else _choose_row_tile(rows, HW, itemsize, blk_target)

    if r_tile > 0:
        # ---- single-pass path: exactly one read + one write of x ----
        row_steps = pl.cdiv(rows, r_tile)
        rows_ceil = row_steps * r_tile
        wb = jnp.stack([w_eff.reshape(rows), b_eff.reshape(rows)], axis=-1)  # (rows, 2)
        if rows_ceil != rows:
            # Tiny pad (N*C*8 bytes) so the in-kernel pl.ds stays in bounds.
            wb = jnp.pad(wb, ((0, rows_ceil - rows), (0, 0)))

        out = pl.pallas_call(
            functools.partial(_cin_kernel, inv_hw=1.0 / HW, r_tile=r_tile),
            out_shape=jax.ShapeDtypeStruct((rows, HW), x.dtype),
            grid_spec=pltpu.PrefetchScalarGridSpec(
                num_scalar_prefetch=0,
                grid=(row_steps,),
                in_specs=[
                    pl.BlockSpec((r_tile, HW), lambda i: (i, 0)),
                    # weight/bias table VMEM-resident across the whole grid
                    pl.BlockSpec((rows_ceil, 2), lambda i: (0, 0)),
                ],
                out_specs=pl.BlockSpec((r_tile, HW), lambda i: (i, 0)),
            ),
            compiler_params=pltpu.CompilerParams(
                dimension_semantics=("parallel",),
                vmem_limit_bytes=vmem_limit,
            ),
            cost_estimate=pl.CostEstimate(
                flops=7 * rows * HW,
                transcendentals=rows,
                bytes_accessed=2 * rows * HW * itemsize + rows * 8,
            ),
        )(x2, wb)
        return out.reshape(N, C, H, W)

    # ---- column-split fallback (very large H*W): stats + apply kernels ----
    sub = _sublane_multiple(itemsize)
    r_cs = rows if rows <= sub else sub
    if col_tile is None:
        c_tile = (blk_target // (max(r_cs, 1) * itemsize)) // 128 * 128
        c_tile = max(128, min(c_tile, _round_up(HW, 128)))
    else:
        c_tile = col_tile
    row_steps = pl.cdiv(rows, r_cs)
    col_steps = pl.cdiv(HW, c_tile)
    need_col_mask = (HW % c_tile) != 0

    s1, s2 = pl.pallas_call(
        functools.partial(_stats_kernel, hw=HW, c_tile=c_tile,
                          need_col_mask=need_col_mask),
        out_shape=(jax.ShapeDtypeStruct((rows, 1), jnp.float32),
                   jax.ShapeDtypeStruct((rows, 1), jnp.float32)),
        grid_spec=pltpu.PrefetchScalarGridSpec(
            num_scalar_prefetch=0,
            grid=(row_steps, col_steps),
            in_specs=[pl.BlockSpec((r_cs, c_tile), lambda i, j: (i, j))],
            out_specs=[pl.BlockSpec((r_cs, 1), lambda i, j: (i, 0)),
                       pl.BlockSpec((r_cs, 1), lambda i, j: (i, 0))],
        ),
        compiler_params=pltpu.CompilerParams(
            dimension_semantics=("parallel", "arbitrary"),
            vmem_limit_bytes=vmem_limit,
        ),
        cost_estimate=pl.CostEstimate(
            flops=3 * rows * HW, transcendentals=0,
            bytes_accessed=rows * HW * itemsize + rows * 8,
        ),
    )(x2)

    inv_hw = 1.0 / HW
    mean = s1 * inv_hw                                                 # (rows,1)
    # TODO(synk): fallback path uses single-pass variance (E[x^2]-E[x]^2);
    # a centered refinement (Chan-style combine) would be more robust here.
    var = jnp.maximum(s2 * inv_hw - mean * mean, 0.0)
    scale = jax.lax.rsqrt(var + EPS) * w_eff.reshape(rows, 1)
    shift = b_eff.reshape(rows, 1) - mean * scale
    ss = jnp.concatenate([scale, shift], axis=-1)                      # (rows,2)

    out = pl.pallas_call(
        _apply_kernel,
        out_shape=jax.ShapeDtypeStruct((rows, HW), x.dtype),
        grid_spec=pltpu.PrefetchScalarGridSpec(
            num_scalar_prefetch=0,
            grid=(row_steps, col_steps),
            in_specs=[pl.BlockSpec((r_cs, c_tile), lambda i, j: (i, j)),
                      pl.BlockSpec((r_cs, 2), lambda i, j: (i, 0))],
            out_specs=pl.BlockSpec((r_cs, c_tile), lambda i, j: (i, j)),
        ),
        compiler_params=pltpu.CompilerParams(
            dimension_semantics=("parallel", "parallel"),
            vmem_limit_bytes=vmem_limit,
        ),
        cost_estimate=pl.CostEstimate(
            flops=2 * rows * HW, transcendentals=0,
            bytes_accessed=2 * rows * HW * itemsize + rows * 8,
        ),
    )(x2, ss)
    return out.reshape(N, C, H, W)


def _reference(x, style_control, weights, biases):
    # Pure-JAX emulation of the PyTorch forward loop, for verification.
    N, C, H, W = x.shape
    Bs, S = style_control.shape
    outs = []
    for i in range(N):
        sc = style_control[i % Bs]
        mean = jnp.mean(x[i], axis=(1, 2), keepdims=True)
        var = jnp.mean((x[i] - mean) ** 2, axis=(1, 2), keepdims=True)
        norm = (x[i] - mean) / jnp.sqrt(var + EPS)
        acc = jnp.zeros_like(x[i])
        tot = jnp.float32(0.0)
        for j in range(S):
            tot = tot + sc[j]
            acc = acc + sc[j] * (norm * weights[j][:, None, None]
                                 + biases[j][:, None, None])
        outs.append(acc / tot)
    return jnp.stack(outs)


if __name__ == "__main__":
    key = jax.random.PRNGKey(0)
    k1, k2, k3, k4 = jax.random.split(key, 4)

    N, C, H, W = 2, 4, 16, 16
    style_num = 3

    x = jax.random.normal(k1, (N, C, H, W), jnp.float32)
    style_control = jax.random.uniform(k2, (N, style_num), jnp.float32, 0.1, 1.0)
    # InstanceNorm2d(affine=True) params per style: weight (C,), bias (C,)
    # (PyTorch default init is weight=1, bias=0; perturbed so test is non-trivial).
    weights = 1.0 + 0.1 * jax.random.normal(k3, (style_num, C), jnp.float32)
    biases = 0.1 * jax.random.normal(k4, (style_num, C), jnp.float32)

    ref = _reference(x, style_control, weights, biases)

    # Main (single-pass) path.
    out = conditional_instance_norm_2d(x, style_control, weights, biases)
    out = jax.block_until_ready(out)
    assert out.shape == (N, C, H, W)
    assert jnp.allclose(out, ref, atol=1e-4, rtol=1e-4), float(
        jnp.max(jnp.abs(out - ref)))

    # Exercise the large-H*W column-split fallback on the same small inputs.
    out2 = conditional_instance_norm_2d(x, style_control, weights, biases,
                                        force_col_split=True, col_tile=128)
    out2 = jax.block_until_ready(out2)
    assert jnp.allclose(out2, ref, atol=1e-4, rtol=1e-4), float(
        jnp.max(jnp.abs(out2 - ref)))

    # Exercise a non-multiple-of-128 H*W (no padding, full-extent last block).
    H2, W2 = 10, 10
    x3 = jax.random.normal(k1, (N, C, H2, W2), jnp.float32)
    ref3 = _reference(x3, style_control, weights, biases)
    out3 = conditional_instance_norm_2d(x3, style_control, weights, biases)
    out3 = jax.block_until_ready(out3)
    assert jnp.allclose(out3, ref3, atol=1e-4, rtol=1e-4), float(
        jnp.max(jnp.abs(out3 - ref3)))

    print("KERNEL_OK")
</pallas_src>

<mosaic_0001>
module attributes {stable_mosaic.version = 11 : i64} {
  func.func @_cin_kernel(%arg0: i32, %arg1: memref<8x256xf32, #tpu.memory_space<vmem>>, %arg2: memref<8x2xf32, #tpu.memory_space<vmem>>, %arg3: memref<8x256xf32, #tpu.memory_space<vmem>>) attributes {dimension_semantics = [#tpu.dimension_semantics<parallel>], iteration_bounds = array<i64: 1>, scalar_prefetch = 0 : i64, scratch_operands = 0 : i64, tpu.core_type = #tpu.core_type<tc>, window_params = [{transform_indices = @transform_0, window_bounds = array<i64: 8, 256>}, {pipeline_mode = #tpu.pipeline_mode<synchronous>, transform_indices = @transform_1, window_bounds = array<i64: 8, 2>}, {transform_indices = @transform_2, window_bounds = array<i64: 8, 256>}]} {
    %c8_i32 = arith.constant 8 : i32
    %0 = arith.muli %arg0, %c8_i32 : i32
    %1 = tpu.assume_multiple %0, 8 : i32
    %2 = arith.index_cast %1 : i32 to index
    %c0 = arith.constant 0 : index
    %3 = vector.load %arg2[%2, %c0] : memref<8x2xf32, #tpu.memory_space<vmem>>, vector<8x2xf32>
    %4 = vector.extract_strided_slice %3 {offsets = [0, 0], sizes = [8, 1], strides = [1, 1]} : vector<8x2xf32> to vector<8x1xf32>
    %5 = vector.extract_strided_slice %3 {offsets = [0, 1], sizes = [8, 1], strides = [1, 1]} : vector<8x2xf32> to vector<8x1xf32>
    %c0_0 = arith.constant 0 : index
    %c0_1 = arith.constant 0 : index
    %6 = vector.load %arg1[%c0_0, %c0_1] : memref<8x256xf32, #tpu.memory_space<vmem>>, vector<8x256xf32>
    %cst = arith.constant dense<0.000000e+00> : vector<8xf32>
    %7 = vector.multi_reduction <add>, %6, %cst [1] : vector<8x256xf32> to vector<8xf32>
    %8 = vector.shape_cast %7 : vector<8xf32> to vector<8x1xf32>
    %cst_2 = arith.constant 3.906250e-03 : f32
    %9 = vector.broadcast %cst_2 : f32 to vector<8x1xf32>
    %10 = arith.mulf %8, %9 : vector<8x1xf32>
    %c0_3 = arith.constant 0 : index
    %c0_4 = arith.constant 0 : index
    %11 = vector.load %arg1[%c0_3, %c0_4] : memref<8x256xf32, #tpu.memory_space<vmem>>, vector<8x256xf32>
    %12 = vector.broadcast %10 : vector<8x1xf32> to vector<8x256xf32>
    %13 = arith.subf %11, %12 : vector<8x256xf32>
    %14 = arith.mulf %13, %13 : vector<8x256xf32>
    %cst_5 = arith.constant dense<0.000000e+00> : vector<8xf32>
    %15 = vector.multi_reduction <add>, %14, %cst_5 [1] : vector<8x256xf32> to vector<8xf32>
    %16 = vector.shape_cast %15 : vector<8xf32> to vector<8x1xf32>
    %cst_6 = arith.constant 3.906250e-03 : f32
    %17 = vector.broadcast %cst_6 : f32 to vector<8x1xf32>
    %18 = arith.mulf %16, %17 : vector<8x1xf32>
    %cst_7 = arith.constant 9.99999974E-6 : f32
    %19 = vector.broadcast %cst_7 : f32 to vector<8x1xf32>
    %20 = arith.addf %18, %19 : vector<8x1xf32>
    %21 = math.rsqrt %20 : vector<8x1xf32>
    %22 = arith.mulf %21, %4 : vector<8x1xf32>
    %23 = vector.broadcast %22 : vector<8x1xf32> to vector<8x256xf32>
    %24 = arith.mulf %13, %23 : vector<8x256xf32>
    %25 = vector.broadcast %5 : vector<8x1xf32> to vector<8x256xf32>
    %26 = arith.addf %24, %25 : vector<8x256xf32>
    %c0_8 = arith.constant 0 : index
    %c0_9 = arith.constant 0 : index
    %27 = vector.load %arg3[%c0_8, %c0_9] : memref<8x256xf32, #tpu.memory_space<vmem>>, vector<8x256xf32>
    tpu.vector_store %arg3[%c0_8, %c0_9], %26 {strides = array<i32>} : memref<8x256xf32, #tpu.memory_space<vmem>>, vector<8x256xf32>,
    return
  }
  func.func @transform_0(%arg0: i32) -> (i32, i32) {
    %c0_i32 = arith.constant 0 : i32
    %c0_i32_0 = arith.constant 0 : i32
    return %arg0, %c0_i32 : i32, i32
  }
  func.func @transform_1(%arg0: i32) -> (i32, i32) {
    %c0_i32 = arith.constant 0 : i32
    %c0_i32_0 = arith.constant 0 : i32
    %c0_i32_1 = arith.constant 0 : i32
    return %c0_i32, %c0_i32_0 : i32, i32
  }
  func.func @transform_2(%arg0: i32) -> (i32, i32) {
    %c0_i32 = arith.constant 0 : i32
    %c0_i32_0 = arith.constant 0 : i32
    return %arg0, %c0_i32 : i32, i32
  }
}

</mosaic_0001>

<llo_original>
// kernel: tpu_custom_call.1
$region0: #{tpu_custom_call.1}
  #allocation0 [shape = 'u32[]', space=smem, size = 0x4, offset = 0x4, fixed_abs, tag = 'smem constant byte address 0x4 - core index']
  #allocation1 [shape = 'u32[144,128]{1,0:T(1,128)}', space=vmem, size = 0x12000, scoped, tag = 'internal scratch']
  %s0 = inlined_call_operand.hbm [shape: f32[8,256], index: 0, kind: input, shape index: {}]
  %s1 = inlined_call_operand.vmem [shape: f32[8,2], index: 1, kind: input, shape index: {}]
  %s2 = inlined_call_operand.hbm [shape: f32[8,256], index: 2, kind: output, shape index: {}]
  %s3 = sld [smem:[#allocation0]]
  $region22: #{tpu_custom_call.1} parent=0
    _
  %s5 = ssub.s32 1, %s3
  %s6 = scalar_select 0, %s5, %s3
  $region1: #{tpu_custom_call.1} parent=0
    #allocation2 [shape = 'u8[8192]{0}', space=vmem, size = 0x2000, scoped, tag = 'input window, operand 0, single buffered']
    #allocation3 [shape = 's32[1]{0}', space=sflag, size = 0x4, scoped, tag = 'scoped memory for tpu_custom_call.1']
    #allocation4 [shape = 's32[1]{0}', space=sflag, size = 0x4, scoped, tag = 'scoped memory for tpu_custom_call.1']
    #allocation5 [shape = 'u8[8192]{0}', space=vmem, size = 0x2000, scoped, tag = 'output window, operand 0, single buffered']
    %7 = vsyncpa [#allocation3], 0
    %8 = vsyncpa [#allocation4], 0
    // Predicated region
    $region2: #{tpu_custom_call.1} parent=1 // pred_check
      _
    $region3: #{tpu_custom_call.1} parent=1 // pred_check_branch
      %10 = sbr.rel (0) target = $region5
    $region4: #{tpu_custom_call.1} parent=1 // pred_region
      %s12 = ssub.s32 256, 256
      %13 = vsyncadd [#allocation3], %s12
      %s15 = sshll.u32 [#allocation2], 4
      %s16 = int_to_ptr.vmem [resolvable:$true] %s15
      %18 = dma.hbm_to_vmem [thread:$0]  %s0, 256, %s16, [#allocation3]
    $region5: #{tpu_custom_call.1} parent=1 // pred_fallthru
      _
    // Predicated region
    $region6: #{tpu_custom_call.1} parent=1 // pred_check
      _
    $region7: #{tpu_custom_call.1} parent=1 // pred_check_branch
      %20 = sbr.rel (0) target = $region9
    $region8: #{tpu_custom_call.1} parent=1 // pred_region
      _
    $region9: #{tpu_custom_call.1} parent=1 // pred_fallthru
      _
    // Predicated region
    $region10: #{tpu_custom_call.1} parent=1 // pred_check
      _
    $region11: #{tpu_custom_call.1} parent=1 // pred_check_branch
      %22 = sbr.rel (0) target = $region13
    $region12: #{tpu_custom_call.1} parent=1 // pred_region
      %23 = dma.done [#allocation3], 256
    $region13: #{tpu_custom_call.1} parent=1 // pred_fallthru
      _
    %s24 = smul.u32 0, 8
    %s25 = scalar_lea.vmem %s1, %s24
    %v26 = vld [vmem:[%s25] sm:$0xff]
    %v27 = vld [vmem:[#allocation2] sm:$0xff]
    %v28 = vld [vmem:[#allocation2 + $0x8] sm:$0xff]
    %v29 = vadd.f32 %v27, %v28
    %30 = vadd.xlane.f32.xlu0 %v29
    %v31 = vpop.xlane.xlu0 %30
    %v32 = vmul.f32 %v31, 0.00390625
    %v33 = vsub.f32 %v27, %v32
    %v34 = vsub.f32 %v28, %v32
    %v35 = vmul.f32 %v33, %v33
    %v36 = vmul.f32 %v34, %v34
    %v37 = vadd.f32 %v35, %v36
    %38 = vadd.xlane.f32.xlu0 %v37
    %v39 = vpop.xlane.xlu0 %38
    %v40 = vmul.f32 %v39, 0.00390625
    %v41 = vadd.f32 %v40, 1e-05
    %v42 = vrsqrt.pop %v41
    %v43 = vmul.f32 %v42, %v26
    %45 = vset.pattern.permute.xlu0 0
    %46 = vperm.xlu0 %45, %v43
    %v47 = vpop.permute.xlu0 %46
    %v49 = vmul.f32 %v33, %v47
    %v50 = vmul.f32 %v34, %v47
    %52 = vset.pattern.permute.xlu0 1
    %53 = vperm.xlu0 %52, %v26
    %v54 = vpop.permute.xlu0 %53
    %v56 = vadd.f32 %v49, %v54
    %v57 = vadd.f32 %v50, %v54
    %58 = vst [vmem:[#allocation5] sm:$0xff] %v56
    %59 = vst [vmem:[#allocation5 + $0x8] sm:$0xff] %v57
    // Predicated region
    $region14: #{tpu_custom_call.1} parent=1 // pred_check
      _
    $region15: #{tpu_custom_call.1} parent=1 // pred_check_branch
      %61 = sbr.rel (0) target = $region17
    $region16: #{tpu_custom_call.1} parent=1 // pred_region
      %s63 = ssub.s32 256, 256
      %64 = vsyncadd [#allocation4], %s63
      %s66 = sshll.u32 [#allocation5], 4
      %s67 = int_to_ptr.vmem [resolvable:$true] %s66
      %69 = dma.vmem_to_hbm [thread:$0]  %s67, 256, %s2, [#allocation4]
    $region17: #{tpu_custom_call.1} parent=1 // pred_fallthru
      _
    // Predicated region
    $region18: #{tpu_custom_call.1} parent=1 // pred_check
      _
    $region19: #{tpu_custom_call.1} parent=1 // pred_check_branch
      %71 = sbr.rel (0) target = $region21
    $region20: #{tpu_custom_call.1} parent=1 // pred_region
      %72 = dma.done [#allocation4], 256
    $region21: #{tpu_custom_call.1} parent=1 // pred_fallthru
      _
    %73 = vsyncpa [#allocation3], 1
    %74 = vsyncpa [#allocation4], 1

</llo_original>
